<compile_context>
chip_gen: v7x
topology: tpu7x:2x2x1
jax: 0.10.0
libtpu: 0.0.40
codegen_flags: <defaults>
</compile_context>

<pallas_src>
import math

import jax
import jax.numpy as jnp
from jax.experimental import pallas as pl
from jax.experimental.pallas import tpu as pltpu


def _pe_add_kernel(x_ref, pe_ref, o_ref):
    # Pure VPU elementwise add on lane-dense (rows, B*D) tiles.
    o_ref[...] = x_ref[...] + pe_ref[...]


def make_positional_encoding(d_model: int, max_len: int = 30, dtype=jnp.float32):
    """Deterministically build the pe buffer exactly like the PyTorch __init__."""
    position = jnp.arange(max_len, dtype=jnp.float32)[:, None]              # (max_len, 1)
    div_term = jnp.exp(
        jnp.arange(0, d_model, 2, dtype=jnp.float32) * (-math.log(10000.0) / d_model)
    )                                                                        # (ceil(d/2),)
    angles = position * div_term                                             # (max_len, ceil(d/2))
    pe = jnp.zeros((max_len, d_model), dtype=jnp.float32)
    pe = pe.at[:, 0::2].set(jnp.sin(angles))
    pe = pe.at[:, 1::2].set(jnp.cos(angles)[:, : d_model // 2])              # exact for even d_model
    # pe.unsqueeze(0).transpose(0, 1) -> shape (max_len, 1, d_model)
    return pe[:, None, :].astype(dtype)


# Per-stream tile byte budget.  Pallas double-buffers each of the 3 streams
# (x, pe, out), so peak VMEM ~= 6 * _ROW_TILE_BYTES ~= 12 MiB.
_ROW_TILE_BYTES = 2 * 1024 * 1024

# Below this element count a standalone pallas_call is pure launch/step
# overhead (~0.35 us/step); let XLA fuse the add instead.
_MIN_PALLAS_ELEMENTS = 1 << 16


def positional_encoding_forward(
    x: jax.Array,
    pe: jax.Array,
    *,
    min_pallas_elements: int = _MIN_PALLAS_ELEMENTS,
    row_tile_bytes: int = _ROW_TILE_BYTES,
) -> jax.Array:
    """x: (S, B, D); pe: (max_len, 1, D). Returns x + pe[:S] (broadcast over B)."""
    S, B, D = x.shape
    max_len = pe.shape[0]
    if S > max_len:
        raise ValueError(f"sequence length {S} exceeds positional-encoding max_len {max_len}")

    pe_slice = pe[:S].astype(x.dtype)                     # (S, 1, D)

    if S * B * D < min_pallas_elements:
        # Toy / tiny sizes: an XLA-fused elementwise add beats a kernel launch.
        return x + pe_slice

    cols = B * D
    x2 = x.reshape(S, cols)
    # Materialize the batch broadcast once in the wrapper (layout plumbing, not
    # compute) so the kernel sees two identically shaped lane-dense 2-D tiles.
    pe2 = jnp.broadcast_to(pe_slice, (S, B, D)).reshape(S, cols)

    bytes_per_row = cols * x2.dtype.itemsize
    rows_per_tile = max(1, row_tile_bytes // bytes_per_row)
    if rows_per_tile >= S:
        ts = S                                   # single full block: always layout-legal
    else:
        ts = max(8, (rows_per_tile // 8) * 8)    # second-minor dim must be 8-aligned
    grid = (pl.cdiv(S, ts),)

    out2 = pl.pallas_call(
        _pe_add_kernel,
        out_shape=jax.ShapeDtypeStruct((S, cols), x.dtype),
        grid=grid,
        in_specs=[
            pl.BlockSpec((ts, cols), lambda i: (i, 0)),   # x tile
            pl.BlockSpec((ts, cols), lambda i: (i, 0)),   # pe tile (read once per step)
        ],
        out_specs=pl.BlockSpec((ts, cols), lambda i: (i, 0)),
        compiler_params=pltpu.CompilerParams(
            dimension_semantics=("parallel",),            # shard row grid across TCs (v7x)
        ),
    )(x2, pe2)
    return out2.reshape(S, B, D)


if __name__ == "__main__":
    # --- Test 1: toy size from the spec. Force the Pallas path (below the
    # default dispatch threshold) so the kernel is exercised. ---
    d_model, max_len, seq_len, batch = 32, 30, 8, 2
    key = jax.random.PRNGKey(0)
    x = jax.random.normal(key, (seq_len, batch, d_model), dtype=jnp.float32)
    pe = make_positional_encoding(d_model, max_len=max_len)

    out = positional_encoding_forward(x, pe, min_pallas_elements=0)
    out = jax.block_until_ready(out)
    ref = x + pe[:seq_len]
    assert out.shape == (seq_len, batch, d_model)
    assert jnp.allclose(out, ref, atol=1e-6, rtol=1e-6)

    # --- Test 2: exercise the multi-step pipelined grid with a small row tile
    # (8 rows/step -> grid=(8,), lane-dense 512-wide blocks). ---
    d2, ml2, s2, b2 = 128, 64, 64, 4
    x2 = jax.random.normal(jax.random.PRNGKey(0), (s2, b2, d2), dtype=jnp.float32)
    pe2 = make_positional_encoding(d2, max_len=ml2)
    out2 = positional_encoding_forward(
        x2, pe2, min_pallas_elements=0, row_tile_bytes=8 * b2 * d2 * 4)
    out2 = jax.block_until_ready(out2)
    ref2 = x2 + pe2[:s2]
    assert jnp.allclose(out2, ref2, atol=1e-6, rtol=1e-6)

    # --- Test 3: default dispatch — tiny inputs fall back to the XLA-fused add. ---
    out3 = jax.block_until_ready(positional_encoding_forward(x, pe))
    assert jnp.allclose(out3, ref, atol=1e-6, rtol=1e-6)

    print("KERNEL_OK")
</pallas_src>

<mosaic_0001>
module attributes {stable_mosaic.version = 11 : i64} {
  func.func @_pe_add_kernel(%arg0: i32, %arg1: memref<8x64xf32, #tpu.memory_space<vmem>>, %arg2: memref<8x64xf32, #tpu.memory_space<vmem>>, %arg3: memref<8x64xf32, #tpu.memory_space<vmem>>) attributes {dimension_semantics = [#tpu.dimension_semantics<parallel>], iteration_bounds = array<i64: 1>, scalar_prefetch = 0 : i64, scratch_operands = 0 : i64, tpu.core_type = #tpu.core_type<tc>, window_params = [{transform_indices = @transform_0, window_bounds = array<i64: 8, 64>}, {transform_indices = @transform_1, window_bounds = array<i64: 8, 64>}, {transform_indices = @transform_2, window_bounds = array<i64: 8, 64>}]} {
    %c0 = arith.constant 0 : index
    %c0_0 = arith.constant 0 : index
    %0 = vector.load %arg1[%c0, %c0_0] : memref<8x64xf32, #tpu.memory_space<vmem>>, vector<8x64xf32>
    %c0_1 = arith.constant 0 : index
    %c0_2 = arith.constant 0 : index
    %1 = vector.load %arg2[%c0_1, %c0_2] : memref<8x64xf32, #tpu.memory_space<vmem>>, vector<8x64xf32>
    %2 = arith.addf %0, %1 : vector<8x64xf32>
    %c0_3 = arith.constant 0 : index
    %c0_4 = arith.constant 0 : index
    %3 = vector.load %arg3[%c0_3, %c0_4] : memref<8x64xf32, #tpu.memory_space<vmem>>, vector<8x64xf32>
    tpu.vector_store %arg3[%c0_3, %c0_4], %2 {strides = array<i32>} : memref<8x64xf32, #tpu.memory_space<vmem>>, vector<8x64xf32>,
    return
  }
  func.func @transform_0(%arg0: i32) -> (i32, i32) {
    %c0_i32 = arith.constant 0 : i32
    %c0_i32_0 = arith.constant 0 : i32
    return %arg0, %c0_i32 : i32, i32
  }
  func.func @transform_1(%arg0: i32) -> (i32, i32) {
    %c0_i32 = arith.constant 0 : i32
    %c0_i32_0 = arith.constant 0 : i32
    return %arg0, %c0_i32 : i32, i32
  }
  func.func @transform_2(%arg0: i32) -> (i32, i32) {
    %c0_i32 = arith.constant 0 : i32
    %c0_i32_0 = arith.constant 0 : i32
    return %arg0, %c0_i32 : i32, i32
  }
}

</mosaic_0001>

<llo_original>
// kernel: tpu_custom_call.1
$region0: #{tpu_custom_call.1}
  #allocation0 [shape = 'u32[]', space=smem, size = 0x4, offset = 0x4, fixed_abs, tag = 'smem constant byte address 0x4 - core index']
  #allocation1 [shape = 'u32[144,128]{1,0:T(1,128)}', space=vmem, size = 0x12000, scoped, tag = 'internal scratch']
  %s0 = inlined_call_operand.hbm [shape: f32[8,64], index: 0, kind: input, shape index: {}]
  %s1 = inlined_call_operand.hbm [shape: f32[8,64], index: 1, kind: input, shape index: {}]
  %s2 = inlined_call_operand.hbm [shape: f32[8,64], index: 2, kind: output, shape index: {}]
  %s3 = sld [smem:[#allocation0]]
  $region26: #{tpu_custom_call.1} parent=0
    _
  %s5 = ssub.s32 1, %s3
  %s6 = scalar_select 0, %s5, %s3
  $region1: #{tpu_custom_call.1} parent=0
    #allocation2 [shape = 'u8[4096]{0}', space=vmem, size = 0x1000, scoped, tag = 'input window, operand 0, single buffered']
    #allocation3 [shape = 's32[1]{0}', space=sflag, size = 0x4, scoped, tag = 'scoped memory for tpu_custom_call.1']
    #allocation4 [shape = 's32[1]{0}', space=sflag, size = 0x4, scoped, tag = 'scoped memory for tpu_custom_call.1']
    #allocation5 [shape = 'u8[4096]{0}', space=vmem, size = 0x1000, scoped, tag = 'input window, operand 1, single buffered']
    #allocation6 [shape = 's32[1]{0}', space=sflag, size = 0x4, scoped, tag = 'scoped memory for tpu_custom_call.1']
    #allocation7 [shape = 'u8[4096]{0}', space=vmem, size = 0x1000, scoped, tag = 'output window, operand 0, single buffered']
    %7 = vsyncpa [#allocation3], 0
    %8 = vsyncpa [#allocation6], 0
    %9 = vsyncpa [#allocation4], 0
    // Predicated region
    $region2: #{tpu_custom_call.1} parent=1 // pred_check
      _
    $region3: #{tpu_custom_call.1} parent=1 // pred_check_branch
      %11 = sbr.rel (0) target = $region5
    $region4: #{tpu_custom_call.1} parent=1 // pred_region
      %s13 = ssub.s32 128, 128
      %14 = vsyncadd [#allocation3], %s13
      %s16 = sshll.u32 [#allocation2], 4
      %s17 = int_to_ptr.vmem [resolvable:$true] %s16
      %19 = dma.hbm_to_vmem [thread:$0]  %s0, 128, %s17, [#allocation3]
    $region5: #{tpu_custom_call.1} parent=1 // pred_fallthru
      _
    // Predicated region
    $region6: #{tpu_custom_call.1} parent=1 // pred_check
      _
    $region7: #{tpu_custom_call.1} parent=1 // pred_check_branch
      %21 = sbr.rel (0) target = $region9
    $region8: #{tpu_custom_call.1} parent=1 // pred_region
      %s23 = ssub.s32 128, 128
      %24 = vsyncadd [#allocation6], %s23
      %s26 = sshll.u32 [#allocation5], 4
      %s27 = int_to_ptr.vmem [resolvable:$true] %s26
      %29 = dma.hbm_to_vmem [thread:$0]  %s1, 128, %s27, [#allocation6]
    $region9: #{tpu_custom_call.1} parent=1 // pred_fallthru
      _
    // Predicated region
    $region10: #{tpu_custom_call.1} parent=1 // pred_check
      _
    $region11: #{tpu_custom_call.1} parent=1 // pred_check_branch
      %31 = sbr.rel (0) target = $region13
    $region12: #{tpu_custom_call.1} parent=1 // pred_region
      %32 = dma.done [#allocation3], 128
    $region13: #{tpu_custom_call.1} parent=1 // pred_fallthru
      _
    // Predicated region
    $region14: #{tpu_custom_call.1} parent=1 // pred_check
      _
    $region15: #{tpu_custom_call.1} parent=1 // pred_check_branch
      %34 = sbr.rel (0) target = $region17
    $region16: #{tpu_custom_call.1} parent=1 // pred_region
      %35 = dma.done [#allocation6], 128
    $region17: #{tpu_custom_call.1} parent=1 // pred_fallthru
      _
    %v36 = vld [vmem:[#allocation2] sm:$0xff]
    %v37 = vld [vmem:[#allocation5] sm:$0xff]
    %v38 = vadd.f32 %v36, %v37
    %vm39 = vcmask 523264
    %40 = vst.msk [vmem:[#allocation7] sm:$0xff] %vm39, %v38
    // Predicated region
    $region18: #{tpu_custom_call.1} parent=1 // pred_check
      _
    $region19: #{tpu_custom_call.1} parent=1 // pred_check_branch
      %42 = sbr.rel (0) target = $region21
    $region20: #{tpu_custom_call.1} parent=1 // pred_region
      %s44 = ssub.s32 128, 128
      %45 = vsyncadd [#allocation4], %s44
      %s47 = sshll.u32 [#allocation7], 4
      %s48 = int_to_ptr.vmem [resolvable:$true] %s47
      %50 = dma.vmem_to_hbm [thread:$0]  %s48, 128, %s2, [#allocation4]
    $region21: #{tpu_custom_call.1} parent=1 // pred_fallthru
      _
    // Predicated region
    $region22: #{tpu_custom_call.1} parent=1 // pred_check
      _
    $region23: #{tpu_custom_call.1} parent=1 // pred_check_branch
      %52 = sbr.rel (0) target = $region25
    $region24: #{tpu_custom_call.1} parent=1 // pred_region
      %53 = dma.done [#allocation4], 128
    $region25: #{tpu_custom_call.1} parent=1 // pred_fallthru
      _
    %54 = vsyncpa [#allocation3], 1
    %55 = vsyncpa [#allocation6], 1
    %56 = vsyncpa [#allocation4], 1

</llo_original>
